<compile_context>
chip_gen: v6e
topology: v6e:2x2x1
jax: 0.10.0
libtpu: 0.0.40
codegen_flags: <defaults>
</compile_context>

<pallas_src>
import jax
import jax.numpy as jnp
from jax.experimental import pallas as pl
from jax.experimental.pallas import tpu as pltpu

_VMEM_LIMIT = 32 * 1024 * 1024      # explicit scoped-VMEM budget (safe on all gens)
_TILE_BYTES = 2 * 1024 * 1024       # target bytes per x tile (x2 bufs, in+out ~8 MiB)


def _pool_kernel(x_ref, sum_ref):
    # x_ref: (1, C, tile_s) native dtype; sum_ref: (1, 1, C) f32 accumulator.
    @pl.when(pl.program_id(1) == 0)
    def _():
        sum_ref[...] = jnp.zeros_like(sum_ref)

    partial = jnp.sum(x_ref[...].astype(jnp.float32), axis=-1)   # (1, C)
    sum_ref[...] += partial[:, None, :]                          # (1, 1, C)


def _gate_kernel(sum_ref, w1t_ref, b1_ref, w2t_ref, b2_ref, y_ref):
    # sum_ref: (B, C) f32 spatial sums; w1t already carries the 1/S factor.
    h = jnp.dot(sum_ref[...], w1t_ref[...],
                preferred_element_type=jnp.float32) + b1_ref[...]   # (B, r)
    h = jnp.maximum(h, 0.0)
    y = jnp.dot(h, w2t_ref[...],
                preferred_element_type=jnp.float32) + b2_ref[...]   # (B, C)
    y_ref[...] = jax.nn.sigmoid(y)


def _scale_kernel(y_ref, x_ref, o_ref):
    # y_ref: (1, C, 1) gate in x.dtype; x_ref/o_ref: (1, C, tile_s) native dtype.
    o_ref[...] = x_ref[...] * y_ref[...]


def _choose_spatial_tile(S, C, itemsize):
    """Largest multiple-of-128 lane tile under the per-block byte budget."""
    lanes = max(_TILE_BYTES // max(C * itemsize, 1), 128)
    tile = (int(lanes) // 128) * 128
    s_pad128 = ((S + 127) // 128) * 128
    tile = max(128, min(tile, s_pad128))
    s_pad = ((S + tile - 1) // tile) * tile
    return tile, s_pad


def se_block(x, w1, b1, w2, b2):
    """x: (B, C, D, H, W); w1: (r, C); b1: (r,); w2: (C, r); b2: (C,)."""
    B, C, D, H, W = x.shape
    S = D * H * W
    x3 = x.reshape(B, C, S)

    itemsize = jnp.dtype(x.dtype).itemsize
    tile_s, s_pad = _choose_spatial_tile(S, C, itemsize)
    if s_pad != S:
        # TODO(synk): padding costs an extra HBM round-trip of x; prefer spatial
        # shapes whose product is a multiple of 128 when the caller can choose.
        x3 = jnp.pad(x3, ((0, 0), (0, 0), (0, s_pad - S)))
    n_s = s_pad // tile_s

    # ---- pass 1: global average pool, computed as a tiled f32 sum ------------
    sums = pl.pallas_call(
        _pool_kernel,
        out_shape=jax.ShapeDtypeStruct((B, 1, C), jnp.float32),
        grid_spec=pltpu.PrefetchScalarGridSpec(
            num_scalar_prefetch=0,
            grid=(B, n_s),
            in_specs=[pl.BlockSpec((1, C, tile_s), lambda b, s: (b, 0, s))],
            out_specs=pl.BlockSpec((1, 1, C), lambda b, s: (b, 0, 0)),
        ),
        compiler_params=pltpu.CompilerParams(
            dimension_semantics=("parallel", "arbitrary"),
            vmem_limit_bytes=_VMEM_LIMIT),
    )(x3)

    # ---- pass 2: tiny FC1 -> ReLU -> FC2 -> sigmoid gate (all in VMEM) -------
    inv_s = 1.0 / float(S)
    w1t = (w1.astype(jnp.float32) * inv_s).T                  # (C, r), holds 1/S
    w2t = w2.astype(jnp.float32).T                            # (r, C)
    y = pl.pallas_call(
        _gate_kernel,
        out_shape=jax.ShapeDtypeStruct((B, C), jnp.float32),
        in_specs=[pl.BlockSpec(memory_space=pltpu.MemorySpace.VMEM)] * 5,
        out_specs=pl.BlockSpec(memory_space=pltpu.MemorySpace.VMEM),
    )(sums.reshape(B, C), w1t, b1.reshape(1, -1).astype(jnp.float32),
      w2t, b2.reshape(1, -1).astype(jnp.float32))

    # ---- pass 3: stream x and rescale per channel in the native dtype --------
    y_gate = y.astype(x.dtype).reshape(B, C, 1)
    out = pl.pallas_call(
        _scale_kernel,
        out_shape=jax.ShapeDtypeStruct((B, C, s_pad), x.dtype),
        grid_spec=pltpu.PrefetchScalarGridSpec(
            num_scalar_prefetch=0,
            grid=(B, n_s),
            in_specs=[pl.BlockSpec((1, C, 1), lambda b, s: (b, 0, 0)),
                      pl.BlockSpec((1, C, tile_s), lambda b, s: (b, 0, s))],
            out_specs=pl.BlockSpec((1, C, tile_s), lambda b, s: (b, 0, s)),
        ),
        compiler_params=pltpu.CompilerParams(
            dimension_semantics=("parallel", "parallel"),
            vmem_limit_bytes=_VMEM_LIMIT),
    )(y_gate, x3)

    if s_pad != S:
        out = out[:, :, :S]
    return out.reshape(B, C, D, H, W)


def se_block_ref(x, w1, b1, w2, b2):
    """Plain-JAX reference matching the PyTorch forward."""
    y = jnp.mean(x.astype(jnp.float32), axis=(2, 3, 4))      # (B, C)
    y = jnp.maximum(y @ w1.T + b1, 0.0)
    y = jax.nn.sigmoid(y @ w2.T + b2)
    return (x.astype(jnp.float32) * y[:, :, None, None, None]).astype(x.dtype)


if __name__ == "__main__":
    # Small shapes consistent with the module: channels must be >= reduction.
    B, C, D, H, W = 2, 32, 8, 8, 8          # S = 512 (lane-aligned)
    reduction = 16
    r = C // reduction

    key = jax.random.PRNGKey(0)
    kx, kw1, kb1, kw2, kb2 = jax.random.split(key, 5)

    x = jax.random.normal(kx, (B, C, D, H, W), dtype=jnp.float32)
    # PyTorch Linear layout: weight is (out_features, in_features).
    w1 = jax.random.normal(kw1, (r, C), dtype=jnp.float32) * 0.1
    b1 = jax.random.normal(kb1, (r,), dtype=jnp.float32) * 0.1
    w2 = jax.random.normal(kw2, (C, r), dtype=jnp.float32) * 0.1
    b2 = jax.random.normal(kb2, (C,), dtype=jnp.float32) * 0.1

    out = se_block(x, w1, b1, w2, b2)
    out = jax.block_until_ready(out)

    ref = se_block_ref(x, w1, b1, w2, b2)
    assert out.shape == (B, C, D, H, W)
    assert jnp.allclose(out, ref, atol=1e-5, rtol=1e-5)

    print("KERNEL_OK")
</pallas_src>

<mosaic_0001>
module attributes {stable_mosaic.version = 11 : i64} {
  func.func @_pool_kernel(%arg0: i32, %arg1: i32, %arg2: memref<1x32x512xf32, #tpu.memory_space<vmem>>, %arg3: memref<1x1x32xf32, #tpu.memory_space<vmem>>) attributes {dimension_semantics = [#tpu.dimension_semantics<parallel>, #tpu.dimension_semantics<arbitrary>], iteration_bounds = array<i64: 2, 1>, scalar_prefetch = 0 : i64, scratch_operands = 0 : i64, tpu.core_type = #tpu.core_type<tc>, window_params = [{transform_indices = @transform_0, window_bounds = array<i64: 1, 32, 512>}, {transform_indices = @transform_1, window_bounds = array<i64: 1, 1, 32>}]} {
    %c0_i32 = arith.constant 0 : i32
    %0 = arith.cmpi eq, %arg1, %c0_i32 : i32
    %1 = arith.extui %0 : i1 to i32
    %c0_i32_0 = arith.constant 0 : i32
    %2 = arith.cmpi ne, %1, %c0_i32_0 : i32
    scf.if %2 {
      %cst_9 = arith.constant 0.000000e+00 : f32
      %9 = vector.broadcast %cst_9 : f32 to vector<1x1x32xf32>
      %c0_10 = arith.constant 0 : index
      %c0_11 = arith.constant 0 : index
      %c0_12 = arith.constant 0 : index
      %10 = vector.load %arg3[%c0_10, %c0_11, %c0_12] : memref<1x1x32xf32, #tpu.memory_space<vmem>>, vector<1x1x32xf32>
      tpu.vector_store %arg3[%c0_10, %c0_11, %c0_12], %9 {strides = array<i32>} : memref<1x1x32xf32, #tpu.memory_space<vmem>>, vector<1x1x32xf32>,
    } else {
    }
    %c0 = arith.constant 0 : index
    %c0_1 = arith.constant 0 : index
    %c0_2 = arith.constant 0 : index
    %3 = vector.load %arg2[%c0, %c0_1, %c0_2] : memref<1x32x512xf32, #tpu.memory_space<vmem>>, vector<1x32x512xf32>
    %cst = arith.constant dense<0.000000e+00> : vector<1x32xf32>
    %4 = vector.multi_reduction <add>, %3, %cst [2] : vector<1x32x512xf32> to vector<1x32xf32>
    %c0_3 = arith.constant 0 : index
    %c0_4 = arith.constant 0 : index
    %c0_5 = arith.constant 0 : index
    %5 = vector.load %arg3[%c0_3, %c0_4, %c0_5] : memref<1x1x32xf32, #tpu.memory_space<vmem>>, vector<1x1x32xf32>
    %6 = vector.shape_cast %4 : vector<1x32xf32> to vector<1x1x32xf32>
    %7 = arith.addf %5, %6 : vector<1x1x32xf32>
    %c0_6 = arith.constant 0 : index
    %c0_7 = arith.constant 0 : index
    %c0_8 = arith.constant 0 : index
    %8 = vector.load %arg3[%c0_6, %c0_7, %c0_8] : memref<1x1x32xf32, #tpu.memory_space<vmem>>, vector<1x1x32xf32>
    tpu.vector_store %arg3[%c0_6, %c0_7, %c0_8], %7 {strides = array<i32>} : memref<1x1x32xf32, #tpu.memory_space<vmem>>, vector<1x1x32xf32>,
    return
  }
  func.func @transform_0(%arg0: i32, %arg1: i32) -> (i32, i32, i32) {
    %c0_i32 = arith.constant 0 : i32
    %c0_i32_0 = arith.constant 0 : i32
    return %arg0, %c0_i32, %arg1 : i32, i32, i32
  }
  func.func @transform_1(%arg0: i32, %arg1: i32) -> (i32, i32, i32) {
    %c0_i32 = arith.constant 0 : i32
    %c0_i32_0 = arith.constant 0 : i32
    %c0_i32_1 = arith.constant 0 : i32
    return %arg0, %c0_i32, %c0_i32_0 : i32, i32, i32
  }
}

</mosaic_0001>

<llo_original>
// kernel: tpu_custom_call.1
$region0: #{tpu_custom_call.1}
  #allocation0 [shape = 'u32[]', space=smem, size = 0x4, offset = 0x4, fixed_abs, tag = 'smem constant byte address 0x4 - core index']
  #allocation1 [shape = 'u32[144,128]{1,0:T(1,128)}', space=vmem, size = 0x12000, scoped, tag = 'internal scratch']
  %s0 = inlined_call_operand.hbm [shape: f32[2,32,512], index: 0, kind: input, shape index: {}]
  %s1 = inlined_call_operand.hbm [shape: f32[2,1,32], index: 1, kind: output, shape index: {}]
  %s2 = sld [smem:[#allocation0]]
  $region45: #{tpu_custom_call.1} parent=0
    _
  %s4 = ssub.s32 1, %s2
  %s5 = scalar_select 0, %s4, %s2
  $region1: #{tpu_custom_call.1} parent=0
    #allocation2 [shape = 'u8[131072]{0}', space=vmem, size = 0x20000, scoped, tag = 'input window, operand 0']
    #allocation3 [shape = 's32[2]{0}', space=sflag, size = 0x8, scoped, tag = 'scoped memory for tpu_custom_call.1']
    #allocation4 [shape = 's32[2]{0}', space=sflag, size = 0x8, scoped, tag = 'scoped memory for tpu_custom_call.1']
    #allocation5 [shape = 'u8[1024]{0}', space=vmem, size = 0x400, scoped, tag = 'output window, operand 0']
    %6 = vsyncpa [#allocation3], 0
    %s7 = scalar_lea.sflag [#allocation3], 1
    %8 = vsyncpa %s7, 0
    %9 = vsyncpa [#allocation4], 0
    %s10 = scalar_lea.sflag [#allocation4], 1
    %11 = vsyncpa %s10, 0
    loop: start=0, step=1, limit=4
    $region2: #{tpu_custom_call.1} parent=1 // loop_pre_header
      _
    $region3: #{tpu_custom_call.1} parent=1 // loop_header
      %s13 = sphi 0, %s17
      %p14 = scmp.ge.s32.totalorder %s13, 4
      %s20 = sphi 0, %s32
      %s21 = sphi 0, %s28
      %s22 = sphi 0, %s20
      %s23 = sphi 0, %s21
      %s24 = sphi 0, %s22
      %s25 = sphi 0, %s23
      %s37 = sphi 0, %s39
      %s40 = sphi 0, %s37
      %s41 = sphi 0, %s40
      %s57 = sphi 0, %s41
      %s63 = sphi 0, %s65
      %s66 = sphi 0, %s63
      %s67 = sphi 0, %s66
      %s83 = sphi 0, %s67
    $region4: #{tpu_custom_call.1} parent=1 // loop_header_branch
      %16 = sbr.rel (%p14) target = $region8
    $region5: #{tpu_custom_call.1} parent=1 // loop_body
      %s18 = ssub.s32 %s13, 1
      %s19 = ssub.s32 %s13, 2
      %s26 = sadd.s32 1, %s21
      %p27 = scmp.ge.s32.totalorder %s26, 1
      %s28 = scalar_select %p27, 0, %s26
      %s29 = sadd.s32 1, %s20
      %s30 = scalar_select %p27, %s29, %s20
      %p31 = scmp.ge.s32.totalorder %s30, 2
      %s32 = scalar_select %p31, 0, %s30
      %s33 = ssub.s32 %s20, %s32
      %s34 = ssub.s32 %s21, %s28
      %s35 = sor.u32 %s33, %s34
      %p36 = scmp.eq.s32.totalorder %s35, 0
      %s38 = sadd.s32 %s37, 1
      %s39 = scalar_select %p36, %s37, %s38
      %p42 = pneg %p36
      %p43 = scmp.eq.s32.totalorder %s13, 1
      %p44 = por %p42, %p43
      %p45 = scmp.ne.s32.totalorder %s37, %s40
      %p46 = scmp.eq.s32.totalorder %s13, 0
      %p47 = por %p45, %p46
      %p48 = scmp.ne.s32.totalorder %s37, %s40
      %p49 = scmp.eq.s32.totalorder %s18, 1
      %p50 = por %p48, %p49
      %p51 = scmp.ne.s32.totalorder %s40, %s41
      %p52 = scmp.eq.s32.totalorder %s18, 0
      %p53 = por %p51, %p52
      %p54 = scmp.ne.s32.totalorder %s40, %s41
      %p55 = scmp.eq.s32.totalorder %s19, 1
      %p56 = por %p54, %p55
      %p58 = scmp.ne.s32.totalorder %s41, %s57
      %p59 = scmp.eq.s32.totalorder %s19, 0
      %p60 = por %p58, %p59
      %s61 = ssub.s32 %s20, %s32
      %p62 = scmp.eq.s32.totalorder %s61, 0
      %s64 = sadd.s32 %s63, 1
      %s65 = scalar_select %p62, %s63, %s64
      %p68 = pneg %p62
      %p69 = scmp.eq.s32.totalorder %s13, 1
      %p70 = por %p68, %p69
      %p71 = scmp.ne.s32.totalorder %s63, %s66
      %p72 = scmp.eq.s32.totalorder %s13, 0
      %p73 = por %p71, %p72
      %p74 = scmp.ne.s32.totalorder %s63, %s66
      %p75 = scmp.eq.s32.totalorder %s18, 1
      %p76 = por %p74, %p75
      %p77 = scmp.ne.s32.totalorder %s66, %s67
      %p78 = scmp.eq.s32.totalorder %s18, 0
      %p79 = por %p77, %p78
      %p80 = scmp.ne.s32.totalorder %s66, %s67
      %p81 = scmp.eq.s32.totalorder %s19, 1
      %p82 = por %p80, %p81
      %p84 = scmp.ne.s32.totalorder %s67, %s83
      %p85 = scmp.eq.s32.totalorder %s19, 0
      %p86 = por %p84, %p85
      %p87 = scmp.le.s32.totalorder 1, %s13
      %p88 = scmp.lt.s32.totalorder %s13, 3
      %p89 = pnand %p87, %p88
      %p90 = pneg %p89
      // Predicated region
      $region9: #{tpu_custom_call.1} parent=5 // pred_check
        _
      $region10: #{tpu_custom_call.1} parent=5 // pred_check_branch
        %92 = sbr.rel (%p89) target = $region12
      $region11: #{tpu_custom_call.1} parent=5 // pred_region
        %s93 = ssub.s32 %s13, 1
      $region12: #{tpu_custom_call.1} parent=5 // pred_fallthru
        _
      %p94 = scmp.lt.s32.totalorder %s13, 2
      // Predicated region
      $region13: #{tpu_custom_call.1} parent=5 // pred_check
        %p95 = pneg %p94
      $region14: #{tpu_custom_call.1} parent=5 // pred_check_branch
        %97 = sbr.rel (%p95) target = $region16
      $region15: #{tpu_custom_call.1} parent=5 // pred_region
        // Predicated region
        $region17: #{tpu_custom_call.1} parent=15 // pred_check
          %p98 = pneg %p47
        $region18: #{tpu_custom_call.1} parent=15 // pred_check_branch
          %100 = sbr.rel (%p98) target = $region20
        $region19: #{tpu_custom_call.1} parent=15 // pred_region
          %s101 = sand.u32 %s37, 1
          %s102 = scalar_lea.sflag [#allocation3], %s101
          %s103 = sand.u32 %s37, 1
          %s104 = smul.addr %s103, 128
          %s105 = scalar_lea.vmem [#allocation2], %s104
          %s106 = smul.u32 4, %s21
          %s108 = ssub.s32 2048, 2048
          %109 = vsyncadd %s102, %s108
          %s110 = smul.addr %s20, 16
          %s111 = sadd.s32 %s106, %s110
          %s112 = smul.addr %s111, 128
          %s113 = scalar_lea.hbm %s0, %s112
          %s114 = sshll.u32 %s105, 4
          %s115 = int_to_ptr.vmem [resolvable:$true] %s114
          %120 = dma.hbm_to_vmem [thread:$0]  %s113, 2048, %s115, %s102, 512, 512, 32
        $region20: #{tpu_custom_call.1} parent=15 // pred_fallthru
          _
      $region16: #{tpu_custom_call.1} parent=5 // pred_fallthru
        _
      %p121 = scmp.le.s32.totalorder 1, %s13
      %p122 = scmp.lt.s32.totalorder %s13, 3
      %p123 = pnand %p121, %p122
      %p124 = pneg %p123
      // Predicated region
      $region21: #{tpu_custom_call.1} parent=5 // pred_check
        _
      $region22: #{tpu_custom_call.1} parent=5 // pred_check_branch
        %126 = sbr.rel (%p123) target = $region24
      $region23: #{tpu_custom_call.1} parent=5 // pred_region
        %s127 = ssub.s32 %s13, 1
        %s128 = sand.u32 %s40, 1
        %s129 = scalar_lea.sflag [#allocation3], %s128
        %s130 = sand.u32 %s40, 1
        %s131 = smul.addr %s130, 128
        %s132 = scalar_lea.vmem [#allocation2], %s131
        // Predicated region
        $region25: #{tpu_custom_call.1} parent=23 // pred_check
          %p133 = pneg %p53
        $region26: #{tpu_custom_call.1} parent=23 // pred_check_branch
          %135 = sbr.rel (%p133) target = $region28
        $region27: #{tpu_custom_call.1} parent=23 // pred_region
          %136 = dma.done %s129, 2048
        $region28: #{tpu_custom_call.1} parent=23 // pred_fallthru
          _
        %s137 = sand.u32 %s40, 1
        %s138 = scalar_lea.sflag [#allocation3], %s137
        %s139 = sand.u32 %s40, 1
        %s140 = smul.addr %s139, 128
        %s141 = scalar_lea.vmem [#allocation2], %s140
        %p142 = pneg %p53
        %p143 = pneg %p50
        %p144 = pneg %p79
        %p145 = pneg %p76
        %s146 = sand.u32 %s66, 1
        %s147 = scalar_lea.sflag [#allocation4], %s146
        %s148 = sand.u32 %s66, 1
        %s149 = scalar_lea.vmem [#allocation5], %s148
        %s150 = smul.u32 4, %s23
        %p151 = scmp.eq.s32.totalorder %s23, 0
        // Predicated region
        $region29: #{tpu_custom_call.1} parent=23 // pred_check
          %p152 = pneg %p151
        $region30: #{tpu_custom_call.1} parent=23 // pred_check_branch
          %154 = sbr.rel (%p152) target = $region32
        $region31: #{tpu_custom_call.1} parent=23 // pred_region
          %vm155 = vcmask 253952
          %156 = vst.msk [vmem:[%s149] sm:$0x1] %vm155, 0.0
        $region32: #{tpu_custom_call.1} parent=23 // pred_fallthru
          _
        %v157 = vld [vmem:[%s132] sm:$0xff]
        %v158 = vld [vmem:[%s132 + $0x8] sm:$0xff]
        %v159 = vld [vmem:[%s132 + $0x10] sm:$0xff]
        %v160 = vld [vmem:[%s132 + $0x18] sm:$0xff]
        %v161 = vld [vmem:[%s132 + $0x20] sm:$0xff]
        %v162 = vld [vmem:[%s132 + $0x28] sm:$0xff]
        %v163 = vld [vmem:[%s132 + $0x30] sm:$0xff]
        %v164 = vld [vmem:[%s132 + $0x38] sm:$0xff]
        %v165 = vld [vmem:[%s132 + $0x40] sm:$0xff]
        %v166 = vld [vmem:[%s132 + $0x48] sm:$0xff]
        %v167 = vld [vmem:[%s132 + $0x50] sm:$0xff]
        %v168 = vld [vmem:[%s132 + $0x58] sm:$0xff]
        %v169 = vld [vmem:[%s132 + $0x60] sm:$0xff]
        %v170 = vld [vmem:[%s132 + $0x68] sm:$0xff]
        %v171 = vld [vmem:[%s132 + $0x70] sm:$0xff]
        %v172 = vld [vmem:[%s132 + $0x78] sm:$0xff]
        %v173 = vadd.f32 %v157, %v158
        %v174 = vadd.f32 %v173, %v159
        %v175 = vadd.f32 %v174, %v160
        %176 = vadd.xlane.f32.xlu0 %v175
        %v177 = vpop.xlane.xlu0 %176
        %v178 = vadd.f32 %v161, %v162
        %v179 = vadd.f32 %v178, %v163
        %v180 = vadd.f32 %v179, %v164
        %181 = vadd.xlane.f32.xlu0 %v180
        %v182 = vpop.xlane.xlu0 %181
        %v183 = vadd.f32 %v165, %v166
        %v184 = vadd.f32 %v183, %v167
        %v185 = vadd.f32 %v184, %v168
        %186 = vadd.xlane.f32.xlu0 %v185
        %v187 = vpop.xlane.xlu0 %186
        %v188 = vadd.f32 %v169, %v170
        %v189 = vadd.f32 %v188, %v171
        %v190 = vadd.f32 %v189, %v172
        %191 = vadd.xlane.f32.xlu0 %v190
        %v192 = vpop.xlane.xlu0 %191
        %v193 = vld [vmem:[%s149] sm:$0x1]
        %v198 = vlaneseq
        %v199 = vshrl.u32 %v198, 7
        %v200 = vsub.s32 0, %v199
        %v201 = vrot.slane %v177, %v200
        %v202 = vlaneseq
        %v203 = vshrl.u32 %v202, 7
        %v204 = vsub.s32 1, %v203
        %v205 = vrot.slane %v177, %v204
        %v206 = vlaneseq
        %v207 = vshrl.u32 %v206, 7
        %v208 = vsub.s32 2, %v207
        %v209 = vrot.slane %v177, %v208
        %v210 = vlaneseq
        %v211 = vshrl.u32 %v210, 7
        %v212 = vsub.s32 3, %v211
        %v213 = vrot.slane %v177, %v212
        %v214 = vlaneseq
        %v215 = vshrl.u32 %v214, 7
        %v216 = vsub.s32 4, %v215
        %v217 = vrot.slane %v177, %v216
        %v218 = vlaneseq
        %v219 = vshrl.u32 %v218, 7
        %v220 = vsub.s32 5, %v219
        %v221 = vrot.slane %v177, %v220
        %v222 = vlaneseq
        %v223 = vshrl.u32 %v222, 7
        %v224 = vsub.s32 6, %v223
        %v225 = vrot.slane %v177, %v224
        %v226 = vlaneseq
        %v227 = vshrl.u32 %v226, 7
        %v228 = vsub.s32 7, %v227
        %v229 = vrot.slane %v177, %v228
        %v230 = vlaneseq
        %v231 = vshrl.u32 %v230, 7
        %v232 = vsub.s32 0, %v231
        %v233 = vrot.slane %v182, %v232
        %v234 = vlaneseq
        %v235 = vshrl.u32 %v234, 7
        %v236 = vsub.s32 1, %v235
        %v237 = vrot.slane %v182, %v236
        %v238 = vlaneseq
        %v239 = vshrl.u32 %v238, 7
        %v240 = vsub.s32 2, %v239
        %v241 = vrot.slane %v182, %v240
        %v242 = vlaneseq
        %v243 = vshrl.u32 %v242, 7
        %v244 = vsub.s32 3, %v243
        %v245 = vrot.slane %v182, %v244
        %v246 = vlaneseq
        %v247 = vshrl.u32 %v246, 7
        %v248 = vsub.s32 4, %v247
        %v249 = vrot.slane %v182, %v248
        %v250 = vlaneseq
        %v251 = vshrl.u32 %v250, 7
        %v252 = vsub.s32 5, %v251
        %v253 = vrot.slane %v182, %v252
        %v254 = vlaneseq
        %v255 = vshrl.u32 %v254, 7
        %v256 = vsub.s32 6, %v255
        %v257 = vrot.slane %v182, %v256
        %v258 = vlaneseq
        %v259 = vshrl.u32 %v258, 7
        %v260 = vsub.s32 7, %v259
        %v261 = vrot.slane %v182, %v260
        %v262 = vlaneseq
        %v263 = vshrl.u32 %v262, 7
        %v264 = vsub.s32 0, %v263
        %v265 = vrot.slane %v187, %v264
        %v266 = vlaneseq
        %v267 = vshrl.u32 %v266, 7
        %v268 = vsub.s32 1, %v267
        %v269 = vrot.slane %v187, %v268
        %v270 = vlaneseq
        %v271 = vshrl.u32 %v270, 7
        %v272 = vsub.s32 2, %v271
        %v273 = vrot.slane %v187, %v272
        %v274 = vlaneseq
        %v275 = vshrl.u32 %v274, 7
        %v276 = vsub.s32 3, %v275
        %v277 = vrot.slane %v187, %v276
        %v278 = vlaneseq
        %v279 = vshrl.u32 %v278, 7
        %v280 = vsub.s32 4, %v279
        %v281 = vrot.slane %v187, %v280
        %v282 = vlaneseq
        %v283 = vshrl.u32 %v282, 7
        %v284 = vsub.s32 5, %v283
        %v285 = vrot.slane %v187, %v284
        %v286 = vlaneseq
        %v287 = vshrl.u32 %v286, 7
        %v288 = vsub.s32 6, %v287
        %v289 = vrot.slane %v187, %v288
        %v290 = vlaneseq
        %v291 = vshrl.u32 %v290, 7
        %v292 = vsub.s32 7, %v291
        %v293 = vrot.slane %v187, %v292
        %v294 = vlaneseq
        %v295 = vshrl.u32 %v294, 7
        %v296 = vsub.s32 0, %v295
        %v297 = vrot.slane %v192, %v296
        %v298 = vlaneseq
        %v299 = vshrl.u32 %v298, 7
        %v300 = vsub.s32 1, %v299
        %v301 = vrot.slane %v192, %v300
        %v302 = vlaneseq
        %v303 = vshrl.u32 %v302, 7
        %v304 = vsub.s32 2, %v303
        %v305 = vrot.slane %v192, %v304
        %v306 = vlaneseq
        %v307 = vshrl.u32 %v306, 7
        %v308 = vsub.s32 3, %v307
        %v309 = vrot.slane %v192, %v308
        %v310 = vlaneseq
        %v311 = vshrl.u32 %v310, 7
        %v312 = vsub.s32 4, %v311
        %v313 = vrot.slane %v192, %v312
        %v314 = vlaneseq
        %v315 = vshrl.u32 %v314, 7
        %v316 = vsub.s32 5, %v315
        %v317 = vrot.slane %v192, %v316
        %v318 = vlaneseq
        %v319 = vshrl.u32 %v318, 7
        %v320 = vsub.s32 6, %v319
        %v321 = vrot.slane %v192, %v320
        %v322 = vlaneseq
        %v323 = vshrl.u32 %v322, 7
        %v324 = vsub.s32 7, %v323
        %v325 = vrot.slane %v192, %v324
        %v326 = vcombine.low %v201, %v205
        %v327 = vcombine.low %v209, %v213
        %v328 = vcombine.low %v217, %v221
        %v329 = vcombine.low %v225, %v229
        %v331 = vunpack.c.l.s4 1966171168
        %v332 = vunpack.c.0.s8 %v331
        %v333 = vlaneseq
        %v334 = vshrl.u32 %v333, 7
        %v335 = vsub.s32 %v332, %v334
        %v336 = vrot.slane %v326, %v335
        %v338 = vunpack.c.l.s4 1966171168
        %v339 = vunpack.c.0.s8 %v338
        %v340 = vlaneseq
        %v341 = vshrl.u32 %v340, 7
        %v342 = vsub.s32 %v339, %v341
        %v343 = vrot.slane %v327, %v342
        %v345 = vunpack.c.l.s4 1966171168
        %v346 = vunpack.c.0.s8 %v345
        %v347 = vlaneseq
        %v348 = vshrl.u32 %v347, 7
        %v349 = vsub.s32 %v346, %v348
        %v350 = vrot.slane %v328, %v349
        %v352 = vunpack.c.l.s4 1966171168
        %v353 = vunpack.c.0.s8 %v352
        %v354 = vlaneseq
        %v355 = vshrl.u32 %v354, 7
        %v356 = vsub.s32 %v353, %v355
        %v357 = vrot.slane %v329, %v356
        %v358 = vcombine.low %v336, %v343
        %v359 = vcombine.low %v350, %v357
        %v361 = vunpack.c.l.s4 1966171168
        %v362 = vunpack.c.0.s8 %v361
        %v363 = vlaneseq
        %v364 = vshrl.u32 %v363, 7
        %v365 = vsub.s32 %v362, %v364
        %v366 = vrot.slane %v358, %v365
        %v368 = vunpack.c.l.s4 1966171168
        %v369 = vunpack.c.0.s8 %v368
        %v370 = vlaneseq
        %v371 = vshrl.u32 %v370, 7
        %v372 = vsub.s32 %v369, %v371
        %v373 = vrot.slane %v359, %v372
        %v374 = vcombine.low %v366, %v373
        %v375 = vcombine.low %v233, %v237
        %v376 = vcombine.low %v241, %v245
        %v377 = vcombine.low %v249, %v253
        %v378 = vcombine.low %v257, %v261
        %v380 = vunpack.c.l.s4 1966171168
        %v381 = vunpack.c.0.s8 %v380
        %v382 = vlaneseq
        %v383 = vshrl.u32 %v382, 7
        %v384 = vsub.s32 %v381, %v383
        %v385 = vrot.slane %v375, %v384
        %v387 = vunpack.c.l.s4 1966171168
        %v388 = vunpack.c.0.s8 %v387
        %v389 = vlaneseq
        %v390 = vshrl.u32 %v389, 7
        %v391 = vsub.s32 %v388, %v390
        %v392 = vrot.slane %v376, %v391
        %v394 = vunpack.c.l.s4 1966171168
        %v395 = vunpack.c.0.s8 %v394
        %v396 = vlaneseq
        %v397 = vshrl.u32 %v396, 7
        %v398 = vsub.s32 %v395, %v397
        %v399 = vrot.slane %v377, %v398
        %v401 = vunpack.c.l.s4 1966171168
        %v402 = vunpack.c.0.s8 %v401
        %v403 = vlaneseq
        %v404 = vshrl.u32 %v403, 7
        %v405 = vsub.s32 %v402, %v404
        %v406 = vrot.slane %v378, %v405
        %v407 = vcombine.low %v385, %v392
        %v408 = vcombine.low %v399, %v406
        %v410 = vunpack.c.l.s4 1966171168
        %v411 = vunpack.c.0.s8 %v410
        %v412 = vlaneseq
        %v413 = vshrl.u32 %v412, 7
        %v414 = vsub.s32 %v411, %v413
        %v415 = vrot.slane %v407, %v414
        %v417 = vunpack.c.l.s4 1966171168
        %v418 = vunpack.c.0.s8 %v417
        %v419 = vlaneseq
        %v420 = vshrl.u32 %v419, 7
        %v421 = vsub.s32 %v418, %v420
        %v422 = vrot.slane %v408, %v421
        %v423 = vcombine.low %v415, %v422
        %v424 = vcombine.low %v265, %v269
        %v425 = vcombine.low %v273, %v277
        %v426 = vcombine.low %v281, %v285
        %v427 = vcombine.low %v289, %v293
        %v429 = vunpack.c.l.s4 1966171168
        %v430 = vunpack.c.0.s8 %v429
        %v431 = vlaneseq
        %v432 = vshrl.u32 %v431, 7
        %v433 = vsub.s32 %v430, %v432
        %v434 = vrot.slane %v424, %v433
        %v436 = vunpack.c.l.s4 1966171168
        %v437 = vunpack.c.0.s8 %v436
        %v438 = vlaneseq
        %v439 = vshrl.u32 %v438, 7
        %v440 = vsub.s32 %v437, %v439
        %v441 = vrot.slane %v425, %v440
        %v443 = vunpack.c.l.s4 1966171168
        %v444 = vunpack.c.0.s8 %v443
        %v445 = vlaneseq
        %v446 = vshrl.u32 %v445, 7
        %v447 = vsub.s32 %v444, %v446
        %v448 = vrot.slane %v426, %v447
        %v450 = vunpack.c.l.s4 1966171168
        %v451 = vunpack.c.0.s8 %v450
        %v452 = vlaneseq
        %v453 = vshrl.u32 %v452, 7
        %v454 = vsub.s32 %v451, %v453
        %v455 = vrot.slane %v427, %v454
        %v456 = vcombine.low %v434, %v441
        %v457 = vcombine.low %v448, %v455
        %v459 = vunpack.c.l.s4 1966171168
        %v460 = vunpack.c.0.s8 %v459
        %v461 = vlaneseq
        %v462 = vshrl.u32 %v461, 7
        %v463 = vsub.s32 %v460, %v462
        %v464 = vrot.slane %v456, %v463
        %v466 = vunpack.c.l.s4 1966171168
        %v467 = vunpack.c.0.s8 %v466
        %v468 = vlaneseq
        %v469 = vshrl.u32 %v468, 7
        %v470 = vsub.s32 %v467, %v469
        %v471 = vrot.slane %v457, %v470
        %v472 = vcombine.low %v464, %v471
        %v473 = vcombine.low %v297, %v301
        %v474 = vcombine.low %v305, %v309
        %v475 = vcombine.low %v313, %v317
        %v476 = vcombine.low %v321, %v325
        %v478 = vunpack.c.l.s4 1966171168
        %v479 = vunpack.c.0.s8 %v478
        %v480 = vlaneseq
        %v481 = vshrl.u32 %v480, 7
        %v482 = vsub.s32 %v479, %v481
        %v483 = vrot.slane %v473, %v482
        %v485 = vunpack.c.l.s4 1966171168
        %v486 = vunpack.c.0.s8 %v485
        %v487 = vlaneseq
        %v488 = vshrl.u32 %v487, 7
        %v489 = vsub.s32 %v486, %v488
        %v490 = vrot.slane %v474, %v489
        %v492 = vunpack.c.l.s4 1966171168
        %v493 = vunpack.c.0.s8 %v492
        %v494 = vlaneseq
        %v495 = vshrl.u32 %v494, 7
        %v496 = vsub.s32 %v493, %v495
        %v497 = vrot.slane %v475, %v496
        %v499 = vunpack.c.l.s4 1966171168
        %v500 = vunpack.c.0.s8 %v499
        %v501 = vlaneseq
        %v502 = vshrl.u32 %v501, 7
        %v503 = vsub.s32 %v500, %v502
        %v504 = vrot.slane %v476, %v503
        %v505 = vcombine.low %v483, %v490
        %v506 = vcombine.low %v497, %v504
        %v508 = vunpack.c.l.s4 1966171168
        %v509 = vunpack.c.0.s8 %v508
        %v510 = vlaneseq
        %v511 = vshrl.u32 %v510, 7
        %v512 = vsub.s32 %v509, %v511
        %v513 = vrot.slane %v505, %v512
        %v515 = vunpack.c.l.s4 1966171168
        %v516 = vunpack.c.0.s8 %v515
        %v517 = vlaneseq
        %v518 = vshrl.u32 %v517, 7
        %v519 = vsub.s32 %v516, %v518
        %v520 = vrot.slane %v506, %v519
        %v521 = vcombine.low %v513, %v520
        %522 = vset.pattern.permute.xlu0 0
        %523 = vperm.xlu0 %522, %v374
        %v524 = vpop.permute.xlu0 %523
        %525 = vset.pattern.permute.xlu0 0
        %526 = vperm.xlu0 %525, %v423
        %v527 = vpop.permute.xlu0 %526
        %528 = vset.pattern.permute.xlu0 0
        %529 = vperm.xlu0 %528, %v472
        %v530 = vpop.permute.xlu0 %529
        %531 = vset.pattern.permute.xlu0 0
        %532 = vperm.xlu0 %531, %v521
        %v533 = vpop.permute.xlu0 %532
        %v534 = vlaneseq
        %v535 = vand.u32 %v534, 127
        %v536 = vlaneseq
        %v537 = vshrl.u32 %v536, 7
        %v538 = vsub.s32 %v535, %v537
        %v539 = vrot.slane %v524, %v538
        %v540 = vadd.s32 %v535, 4294967288
        %v541 = vlaneseq
        %v542 = vshrl.u32 %v541, 7
        %v543 = vsub.s32 %v540, %v542
        %v544 = vrot.slane %v527, %v543
        %vm545 = vcmask 130112
        %v546 = vsel %vm545, %v544, %v539
        %v547 = vadd.s32 %v535, 4294967280
        %v548 = vlaneseq
        %v549 = vshrl.u32 %v548, 7
        %v550 = vsub.s32 %v547, %v549
        %v551 = vrot.slane %v530, %v550
        %vm552 = vcmask 195712
        %v553 = vsel %vm552, %v551, %v546
        %v554 = vadd.s32 %v535, 4294967272
        %v555 = vlaneseq
        %v556 = vshrl.u32 %v555, 7
        %v557 = vsub.s32 %v554, %v556
        %v558 = vrot.slane %v533, %v557
        %vm559 = vcmask 261312
        %v560 = vsel %vm559, %v558, %v553
        %v562 = vunpack.c.l.s4 1966171168
        %v563 = vunpack.c.0.s8 %v562
        %v564 = vlaneseq
        %v565 = vshrl.u32 %v564, 7
        %v566 = vsub.s32 %v563, %v565
        %v567 = vrot.slane %v560, %v566
        %v569 = vunpack.c.l.s4 1966171168
        %v570 = vunpack.c.0.s8 %v569
        %v571 = vlaneseq
        %v572 = vshrl.u32 %v571, 7
        %v573 = vsub.s32 %v570, %v572
        %v574 = vrot.slane %v567, %v573
        %v576 = vadd.f32 %v193, %v574
        %vm577 = vcmask 253952
        %578 = vst.msk [vmem:[%s149] sm:$0x1] %vm577, %v576
        %s579 = sand.u32 %s66, 1
        %s580 = scalar_lea.sflag [#allocation4], %s579
        %s581 = sand.u32 %s66, 1
        %s582 = scalar_lea.vmem [#allocation5], %s581
        // Predicated region
        $region33: #{tpu_custom_call.1} parent=23 // pred_check
          %p583 = pneg %p76
        $region34: #{tpu_custom_call.1} parent=23 // pred_check_branch
          %585 = sbr.rel (%p583) target = $region36
        $region35: #{tpu_custom_call.1} parent=23 // pred_region
          %s587 = ssub.s32 16, 16
          %588 = vsyncadd %s580, %s587
          %s589 = smul.addr %s22, 16
          %s590 = scalar_lea.hbm %s1, %s589
          %s592 = sshll.u32 %s582, 4
          %s593 = int_to_ptr.vmem [resolvable:$true] %s592
          %595 = dma.vmem_to_hbm [thread:$0]  %s593, 16, %s590, %s580
        $region36: #{tpu_custom_call.1} parent=23 // pred_fallthru
          _
      $region24: #{tpu_custom_call.1} parent=5 // pred_fallthru
        _
      %p596 = scmp.le.s32.totalorder 2, %s13
      // Predicated region
      $region37: #{tpu_custom_call.1} parent=5 // pred_check
        %p597 = pneg %p596
      $region38: #{tpu_custom_call.1} parent=5 // pred_check_branch
        %599 = sbr.rel (%p597) target = $region40
      $region39: #{tpu_custom_call.1} parent=5 // pred_region
        %s600 = ssub.s32 %s13, 2
        // Predicated region
        $region41: #{tpu_custom_call.1} parent=39 // pred_check
          %p601 = pneg %p82
        $region42: #{tpu_custom_call.1} parent=39 // pred_check_branch
          %603 = sbr.rel (%p601) target = $region44
        $region43: #{tpu_custom_call.1} parent=39 // pred_region
          %s604 = sand.u32 %s67, 1
          %s605 = scalar_lea.sflag [#allocation4], %s604
          %s606 = sand.u32 %s67, 1
          %s607 = scalar_lea.vmem [#allocation5], %s606
          %608 = dma.done %s605, 16
        $region44: #{tpu_custom_call.1} parent=39 // pred_fallthru
          _
      $region40: #{tpu_custom_call.1} parent=5 // pred_fallthru
        _
    $region6: #{tpu_custom_call.1} parent=1 // loop_footer
      %s17 = sadd.s32 1, %s13
    $region7: #{tpu_custom_call.1} parent=1 // loop_footer_branch
      %12 = sbr.rel target = $region3
    $region8: #{tpu_custom_call.1} parent=1 // loop_exit
      _
    %609 = vsyncpa [#allocation3], 1
    %s610 = scalar_lea.sflag [#allocation3], 1
    %611 = vsyncpa %s610, 1
    %612 = vsyncpa [#allocation4], 1
    %s613 = scalar_lea.sflag [#allocation4], 1
    %614 = vsyncpa %s613, 1

</llo_original>
